<compile_context>
chip_gen: v5e
topology: v5e:2x2
jax: 0.10.0
libtpu: 0.0.40
codegen_flags: <defaults>
</compile_context>

<pallas_src>
import jax
import jax.numpy as jnp
from jax.experimental import pallas as pl
from jax.experimental.pallas import tpu as pltpu


def bimap_kernel(wk_ref, x_ref, o_ref):
    # Single MXU call per grid step:
    #   (Bt, n*n) @ (n*n, m*m) -> (Bt, m*m), f32 accumulation.
    o_ref[...] = jnp.dot(
        x_ref[...], wk_ref[...], preferred_element_type=jnp.float32
    ).astype(o_ref.dtype)


def _choose_block_b(B, n, target_x_bytes=4 << 20):
    """Batch rows per grid step: large enough to fill MXU rows and amortize the
    per-step overhead (Bt*... >> 256), small enough that the double-buffered X
    tile stays a few MB (near the HBM-roofline sweet spot, well inside VMEM)."""
    bt = max(8, min(4096, target_x_bytes // (n * n * 4)))
    bt = (bt // 8) * 8
    b_up8 = ((B + 7) // 8) * 8   # don't pad a tiny batch up to a huge block
    return int(min(bt, b_up8))


def bimap_forward(W, X, *, block_b=None, compute_dtype=None):
    """W: (n, m), X: (B, n, n) -> (B, m, m), computing W^T @ X @ W per batch."""
    n, m = W.shape
    B = X.shape[0]
    assert X.shape == (B, n, n)
    out_dtype = X.dtype

    Bt = block_b if block_b is not None else _choose_block_b(B, n)
    nblocks = pl.cdiv(B, Bt)
    B_pad = nblocks * Bt

    # vec(X): free row-major metadata reshape.  Zero-pad the batch so every
    # grid step sees a full (Bt, n*n) tile; padded rows give padded outputs
    # that are sliced off at the end.
    Xf = X.reshape(B, n * n)
    if B_pad != B:
        Xf = jnp.pad(Xf, ((0, B_pad - B), (0, 0)))

    # W (x) W, built once outside the kernel:
    #   (W^T X W)[i, j] = sum_{r,k} X[r, k] W[r, i] W[k, j]
    #                   = (vec(X) @ kron(W, W))[i*m + j]
    WK = jnp.kron(W, W)                                      # (n*n, m*m)

    if compute_dtype is not None:                            # optional bf16 path
        Xf = Xf.astype(compute_dtype)
        WK = WK.astype(compute_dtype)

    itemsize = jnp.dtype(Xf.dtype).itemsize
    vmem_bytes = (2 * Bt * n * n * itemsize       # double-buffered X tiles
                  + 2 * Bt * m * m * 4            # double-buffered out tiles
                  + 2 * n * n * m * m * itemsize  # resident W (x) W
                  + (4 << 20))                    # headroom
    vmem_bytes = int(min(max(vmem_bytes, 16 << 20), 64 << 20))

    out = pl.pallas_call(
        bimap_kernel,
        out_shape=jax.ShapeDtypeStruct((B_pad, m * m), out_dtype),
        grid_spec=pltpu.PrefetchScalarGridSpec(
            num_scalar_prefetch=0,
            grid=(nblocks,),
            in_specs=[
                pl.BlockSpec((n * n, m * m), lambda b: (0, 0)),  # W(x)W, resident
                pl.BlockSpec((Bt, n * n), lambda b: (b, 0)),     # Bt vec'd X rows
            ],
            out_specs=pl.BlockSpec((Bt, m * m), lambda b: (b, 0)),
        ),
        compiler_params=pltpu.CompilerParams(
            dimension_semantics=("parallel",),   # v7x: shard batch blocks over 2 TCs
            vmem_limit_bytes=vmem_bytes,
        ),
    )(WK, Xf)

    return out[:B].reshape(B, m, m)


def init_stiefel_W(key, n, m, dtype=jnp.float32):
    """Deterministic equivalent of BiMap.reset_parameters() for Stiefel:
    W0 = rand(n, m);  W = W0 @ (W0^T W0)^{-1/2}  (orthonormal columns).
    Done in plain JAX (eigh); it is a one-time init, not a kernel candidate."""
    W0 = jax.random.uniform(key, (n, m), dtype=dtype)
    gram = W0.T @ W0                                  # (m, m), SPD
    evals, evecs = jnp.linalg.eigh(gram)
    inv_sqrt = (evecs * (1.0 / jnp.sqrt(evals))) @ evecs.T
    return (W0 @ inv_sqrt).astype(dtype)


if __name__ == "__main__":
    key = jax.random.PRNGKey(0)
    k_w, k_x = jax.random.split(key)

    B, n, m = 2, 16, 8                                # shape=(n, m), n >= m

    # Parameter (deterministic init, Stiefel projection).
    W = init_stiefel_W(k_w, n, m)

    # SPD-ish inputs X = A A^T + eps*I  (B, n, n).
    A = jax.random.normal(k_x, (B, n, n), dtype=jnp.float32)
    X = jnp.einsum("bij,bkj->bik", A, A) + 1e-3 * jnp.eye(n, dtype=jnp.float32)

    # NOTE: at B=2, n=16 a fused XLA einsum would also be fine; the kernel pays
    # off for large B (many SPD matrices per forward), which is what it tiles for.
    out = jax.block_until_ready(bimap_forward(W, X))

    # Cross-check against plain-JAX reference of the PyTorch forward.
    ref = jnp.einsum("nm,bnk,kp->bmp", W, X, W)
    assert out.shape == (B, m, m)
    assert jnp.allclose(out, ref, atol=1e-4, rtol=1e-4)

    print("KERNEL_OK")
</pallas_src>

<mosaic_0001>
module attributes {stable_mosaic.version = 11 : i64} {
  func.func @bimap_kernel(%arg0: i32, %arg1: memref<256x64xf32, #tpu.memory_space<vmem>>, %arg2: memref<8x256xf32, #tpu.memory_space<vmem>>, %arg3: memref<8x64xf32, #tpu.memory_space<vmem>>) attributes {dimension_semantics = [#tpu.dimension_semantics<parallel>], iteration_bounds = array<i64: 1>, scalar_prefetch = 0 : i64, scratch_operands = 0 : i64, tpu.core_type = #tpu.core_type<tc>, window_params = [{pipeline_mode = #tpu.pipeline_mode<synchronous>, transform_indices = @transform_0, window_bounds = array<i64: 256, 64>}, {transform_indices = @transform_1, window_bounds = array<i64: 8, 256>}, {transform_indices = @transform_2, window_bounds = array<i64: 8, 64>}]} {
    %c0 = arith.constant 0 : index
    %c0_0 = arith.constant 0 : index
    %0 = vector.load %arg2[%c0, %c0_0] : memref<8x256xf32, #tpu.memory_space<vmem>>, vector<8x256xf32>
    %c0_1 = arith.constant 0 : index
    %c0_2 = arith.constant 0 : index
    %1 = vector.load %arg1[%c0_1, %c0_2] : memref<256x64xf32, #tpu.memory_space<vmem>>, vector<256x64xf32>
    %cst = arith.constant dense<0.000000e+00> : vector<8x64xf32>
    %2 = tpu.matmul %0, %1, %cst {dimension_numbers = #tpu.dot_dimension_numbers<[1], [0], [0], [1], [0, 0, 1, 1], [], []>} : vector<8x256xf32>, vector<256x64xf32>, vector<8x64xf32> -> vector<8x64xf32>
    %c0_3 = arith.constant 0 : index
    %c0_4 = arith.constant 0 : index
    %3 = vector.load %arg3[%c0_3, %c0_4] : memref<8x64xf32, #tpu.memory_space<vmem>>, vector<8x64xf32>
    tpu.vector_store %arg3[%c0_3, %c0_4], %2 {strides = array<i32>} : memref<8x64xf32, #tpu.memory_space<vmem>>, vector<8x64xf32>,
    return
  }
  func.func @transform_0(%arg0: i32) -> (i32, i32) {
    %c0_i32 = arith.constant 0 : i32
    %c0_i32_0 = arith.constant 0 : i32
    %c0_i32_1 = arith.constant 0 : i32
    return %c0_i32, %c0_i32_0 : i32, i32
  }
  func.func @transform_1(%arg0: i32) -> (i32, i32) {
    %c0_i32 = arith.constant 0 : i32
    %c0_i32_0 = arith.constant 0 : i32
    return %arg0, %c0_i32 : i32, i32
  }
  func.func @transform_2(%arg0: i32) -> (i32, i32) {
    %c0_i32 = arith.constant 0 : i32
    %c0_i32_0 = arith.constant 0 : i32
    return %arg0, %c0_i32 : i32, i32
  }
}

</mosaic_0001>

<llo_original>
// kernel: tpu_custom_call.1
$region0: #{tpu_custom_call.1}
  #allocation0 [shape = 'u32[]', space=smem, size = 0x4, offset = 0x4, fixed_abs, tag = 'smem constant byte address 0x4 - core index']
  #allocation1 [shape = 'u32[72,128]{1,0:T(1,128)}', space=vmem, size = 0x9000, scoped, tag = 'internal scratch']
  %s0 = inlined_call_operand.vmem [shape: f32[256,64], index: 0, kind: input, shape index: {}]
  %s1 = inlined_call_operand.vmem [shape: f32[8,256], index: 1, kind: input, shape index: {}]
  %s2 = inlined_call_operand.hbm [shape: f32[8,64], index: 2, kind: output, shape index: {}]
  %s3 = sld [smem:[#allocation0]]
  $region18: #{tpu_custom_call.1} parent=0
    _
  %s5 = ssub.s32 1, %s3
  %s6 = scalar_select 0, %s5, %s3
  $region1: #{tpu_custom_call.1} parent=0
    #allocation2 [shape = 'u8[4096]{0}', space=vmem, size = 0x1000, scoped, tag = 'output window, operand 0, single buffered']
    #allocation3 [shape = 's32[1]{0}', space=sflag, size = 0x4, scoped, tag = 'scoped memory for tpu_custom_call.1']
    %7 = vsyncpa [#allocation3], 0
    // Predicated region
    $region2: #{tpu_custom_call.1} parent=1 // pred_check
      _
    $region3: #{tpu_custom_call.1} parent=1 // pred_check_branch
      %9 = sbr.rel (0) target = $region5
    $region4: #{tpu_custom_call.1} parent=1 // pred_region
      _
    $region5: #{tpu_custom_call.1} parent=1 // pred_fallthru
      _
    // Predicated region
    $region6: #{tpu_custom_call.1} parent=1 // pred_check
      _
    $region7: #{tpu_custom_call.1} parent=1 // pred_check_branch
      %11 = sbr.rel (0) target = $region9
    $region8: #{tpu_custom_call.1} parent=1 // pred_region
      _
    $region9: #{tpu_custom_call.1} parent=1 // pred_fallthru
      _
    %v12 = vld [vmem:[%s1] sm:$0xff]
    %v13 = vld [vmem:[%s1 + $0x8] sm:$0xff]
    %v14 = vld [vmem:[%s0] sm:$0xff]
    %v15 = vld [vmem:[%s0 + $0x8] sm:$0xff]
    %v16 = vld [vmem:[%s0 + $0x10] sm:$0xff]
    %v17 = vld [vmem:[%s0 + $0x18] sm:$0xff]
    %v18 = vld [vmem:[%s0 + $0x20] sm:$0xff]
    %v19 = vld [vmem:[%s0 + $0x28] sm:$0xff]
    %v20 = vld [vmem:[%s0 + $0x30] sm:$0xff]
    %v21 = vld [vmem:[%s0 + $0x38] sm:$0xff]
    %v22 = vld [vmem:[%s0 + $0x40] sm:$0xff]
    %v23 = vld [vmem:[%s0 + $0x48] sm:$0xff]
    %v24 = vld [vmem:[%s0 + $0x50] sm:$0xff]
    %v25 = vld [vmem:[%s0 + $0x58] sm:$0xff]
    %v26 = vld [vmem:[%s0 + $0x60] sm:$0xff]
    %v27 = vld [vmem:[%s0 + $0x68] sm:$0xff]
    %v28 = vld [vmem:[%s0 + $0x70] sm:$0xff]
    %v29 = vld [vmem:[%s0 + $0x78] sm:$0xff]
    %v30 = vld [vmem:[%s0 + $0x80] sm:$0xff]
    %v31 = vld [vmem:[%s0 + $0x88] sm:$0xff]
    %v32 = vld [vmem:[%s0 + $0x90] sm:$0xff]
    %v33 = vld [vmem:[%s0 + $0x98] sm:$0xff]
    %v34 = vld [vmem:[%s0 + $0xa0] sm:$0xff]
    %v35 = vld [vmem:[%s0 + $0xa8] sm:$0xff]
    %v36 = vld [vmem:[%s0 + $0xb0] sm:$0xff]
    %v37 = vld [vmem:[%s0 + $0xb8] sm:$0xff]
    %v38 = vld [vmem:[%s0 + $0xc0] sm:$0xff]
    %v39 = vld [vmem:[%s0 + $0xc8] sm:$0xff]
    %v40 = vld [vmem:[%s0 + $0xd0] sm:$0xff]
    %v41 = vld [vmem:[%s0 + $0xd8] sm:$0xff]
    %v42 = vld [vmem:[%s0 + $0xe0] sm:$0xff]
    %v43 = vld [vmem:[%s0 + $0xe8] sm:$0xff]
    %v44 = vld [vmem:[%s0 + $0xf0] sm:$0xff]
    %v45 = vld [vmem:[%s0 + $0xf8] sm:$0xff]
    %46 = vmatpush.msra.mxu0 %v29
    %47 = vmatpush.msra.mxu0 %v28
    %48 = vmatpush.msra.mxu0 %v27
    %49 = vmatpush.msra.mxu0 %v26
    %50 = vmatpush.msra.mxu0 %v25
    %51 = vmatpush.msra.mxu0 %v24
    %52 = vmatpush.msra.mxu0 %v23
    %53 = vmatpush.msra.mxu0 %v22
    %54 = vmatpush.msra.mxu0 %v21
    %55 = vmatpush.msra.mxu0 %v20
    %56 = vmatpush.msra.mxu0 %v19
    %57 = vmatpush.msra.mxu0 %v18
    %58 = vmatpush.msra.mxu0 %v17
    %59 = vmatpush.msra.mxu0 %v16
    %60 = vmatpush.msra.mxu0 %v15
    %61 = vmatpush.msra.mxu0 %v14
    %62 = vmatmul.f32.gmra.mxu0 %v12
    %v63 = vpop.f32.mrf.mxu0
    %v64 = vadd.f32 0.0, %v63
    %65 = vdwg.mxu0
    %66 = vmatpush.msra.mxu0 %v45
    %67 = vmatpush.msra.mxu0 %v44
    %68 = vmatpush.msra.mxu0 %v43
    %69 = vmatpush.msra.mxu0 %v42
    %70 = vmatpush.msra.mxu0 %v41
    %71 = vmatpush.msra.mxu0 %v40
    %72 = vmatpush.msra.mxu0 %v39
    %73 = vmatpush.msra.mxu0 %v38
    %74 = vmatpush.msra.mxu0 %v37
    %75 = vmatpush.msra.mxu0 %v36
    %76 = vmatpush.msra.mxu0 %v35
    %77 = vmatpush.msra.mxu0 %v34
    %78 = vmatpush.msra.mxu0 %v33
    %79 = vmatpush.msra.mxu0 %v32
    %80 = vmatpush.msra.mxu0 %v31
    %81 = vmatpush.msra.mxu0 %v30
    %82 = vmatmul.f32.gmra.mxu0 %v13
    %v83 = vpop.f32.mrf.mxu0
    %v84 = vadd.f32 %v64, %v83
    %85 = vdwg.mxu0
    %vm86 = vcmask 523264
    %87 = vst.msk [vmem:[#allocation2] sm:$0xff] %vm86, %v84
    // Predicated region
    $region10: #{tpu_custom_call.1} parent=1 // pred_check
      _
    $region11: #{tpu_custom_call.1} parent=1 // pred_check_branch
      %89 = sbr.rel (0) target = $region13
    $region12: #{tpu_custom_call.1} parent=1 // pred_region
      %91 = vsyncadd [#allocation3], 0
      %s93 = sshll.u32 [#allocation2], 4
      %s94 = int_to_ptr.vmem [resolvable:$true] %s93
      %s95 = sshll.u32 %s2, 4
      %s96 = int_to_ptr.hbm [resolvable:$true] %s95
      %98 = dma.vmem_to_hbm [thread:$0]  %s94, 128, %s96, [#allocation3]
    $region13: #{tpu_custom_call.1} parent=1 // pred_fallthru
      _
    // Predicated region
    $region14: #{tpu_custom_call.1} parent=1 // pred_check
      _
    $region15: #{tpu_custom_call.1} parent=1 // pred_check_branch
      %100 = sbr.rel (0) target = $region17
    $region16: #{tpu_custom_call.1} parent=1 // pred_region
      %102 = dma.done [#allocation3], 128
    $region17: #{tpu_custom_call.1} parent=1 // pred_fallthru
      _
    %103 = vsyncpa [#allocation3], 1

</llo_original>
